<compile_context>
chip_gen: v5e
topology: v5e:2x2
jax: 0.10.0
libtpu: 0.0.40
codegen_flags: <defaults>
</compile_context>

<pallas_src>
import functools

import jax
import jax.numpy as jnp
from jax.experimental import pallas as pl
from jax.experimental.pallas import tpu as pltpu


def _ce_bs_kernel(x_ref, t_ref, nll_out, sq_out, *, num_classes, needs_mask):
    """One (1, C, S, 128) logits tile -> partial NLL / Brier sums for that tile."""
    t = t_ref[0]                                          # (S, 128) int32 targets

    # Pass 1: per-position max over classes (short static Python loop; every operand
    # is a fully-occupied (S, 128) f32 plane).
    m = x_ref[0, 0].astype(jnp.float32)
    for c in range(1, num_classes):
        m = jnp.maximum(m, x_ref[0, c].astype(jnp.float32))

    # Pass 2: softmax statistics without ever materializing p.
    sumexp = None
    sum_e2 = None
    shifted_t = None
    for c in range(num_classes):
        sc = x_ref[0, c].astype(jnp.float32) - m          # x_c - max
        e = jnp.exp(sc)                                   # EUP slot
        e2 = e * e
        if c == 0:
            sumexp, sum_e2 = e, e2
            shifted_t = jnp.where(t == c, sc, 0.0)        # single select per class
        else:
            sumexp = sumexp + e
            sum_e2 = sum_e2 + e2
            shifted_t = jnp.where(t == c, sc, shifted_t)

    inv = 1.0 / sumexp                                    # exact: feeds the loss weight
    nll_row = jnp.log(sumexp) - shifted_t                 # -log p(target)
    p_t = jnp.exp(shifted_t) * inv                        # p(target)
    brier_row = 1.0 - 2.0 * p_t + sum_e2 * (inv * inv)    # == sum_c (onehot_c - p_c)^2

    def _store(nll_v, sq_v):
        nll_out[...] = jnp.sum(nll_v, keepdims=True).reshape(1, 1, 1, 1)
        sq_out[...] = jnp.sum(sq_v, keepdims=True).reshape(1, 1, 1, 1)

    if needs_mask:
        # Padded positions (target == -1) live only in the LAST spatial tile of each
        # sample; only that tile pays the masking selects.
        j = pl.program_id(1)
        last = pl.num_programs(1) - 1

        @pl.when(j == last)
        def _():
            valid = t >= 0
            _store(jnp.where(valid, nll_row, 0.0),
                   jnp.where(valid, brier_row, 0.0))

        @pl.when(j != last)
        def _():
            _store(nll_row, brier_row)
    else:
        _store(nll_row, brier_row)


def _pick_spatial_tile(s_total, num_classes, x_itemsize,
                       vmem_budget_bytes=12 * 1024 * 1024, s_max=1024):
    """Choose the sublane tile S_blk and the padded S_total.

    Budget per sublane-row of tile (128 lanes): 2x double-buffered logits block,
    2x double-buffered int32 target block, and ~8 live f32 (S,128) temps.  Keeping the
    total around ~12 MiB leaves headroom under v7x's 32 MiB scoped VMEM and v5e's
    16 MiB default.
    """
    per_s = 128 * (2 * num_classes * x_itemsize + 2 * 4 + 8 * 4)
    cap = vmem_budget_bytes // per_s
    cap = int(max(8, min(s_max, (cap // 8) * 8)))
    if s_total <= cap:
        return s_total, s_total                       # single tile, no raggedness
    for s in range(cap, 7, -8):                       # prefer an exact divisor
        if s_total % s == 0:
            return s, s_total
    s_pad = ((s_total + cap - 1) // cap) * cap        # pad S so tiles divide evenly
    return cap, s_pad


def cross_entropy_weight_bs(inp, target, temperature=1.0, size_average=False):
    """Matches CrossEntropyWeightBS.forward semantics. Returns a scalar."""
    if inp.ndim > 2:
        n, c = inp.shape[0], inp.shape[1]
        x3 = inp.reshape(n, c, -1)                    # (N, C, HW) -- free, no transpose
        t2 = target.reshape(n, -1).astype(jnp.int32)  # (N, HW)
    else:
        # Rare 2-D (R, C) path: samples go to the spatial axis (one real transpose).
        c = inp.shape[1]
        n = 1
        x3 = jnp.transpose(inp, (1, 0))[None]         # (1, C, R)
        t2 = target.reshape(1, -1).astype(jnp.int32)
    hw = x3.shape[2]
    rows = n * hw

    # ---- tile selection: spatial positions fill both sublanes and lanes ----
    s_total = pl.cdiv(hw, 128)
    s_blk, s_pad = _pick_spatial_tile(s_total, c, jnp.dtype(x3.dtype).itemsize)
    hw_pad = s_pad * 128
    num_j = s_pad // s_blk
    needs_mask = hw_pad != hw
    if needs_mask:
        # One-time pad so HW reshapes to (S, 128); padded targets are -1 and are
        # masked out only in the last spatial tile.
        x3 = jnp.pad(x3, ((0, 0), (0, 0), (0, hw_pad - hw)))
        t2 = jnp.pad(t2, ((0, 0), (0, hw_pad - hw)), constant_values=-1)
    x4 = x3.reshape(n, c, s_pad, 128)                 # (N, C, S, 128)
    t3 = t2.reshape(n, s_pad, 128)                    # (N, S, 128)

    kernel = pl.pallas_call(
        functools.partial(_ce_bs_kernel, num_classes=c, needs_mask=needs_mask),
        out_shape=(jax.ShapeDtypeStruct((n, num_j, 1, 1), jnp.float32),
                   jax.ShapeDtypeStruct((n, num_j, 1, 1), jnp.float32)),
        grid=(n, num_j),
        in_specs=[pl.BlockSpec((1, c, s_blk, 128), lambda i, j: (i, 0, j, 0)),
                  pl.BlockSpec((1, s_blk, 128), lambda i, j: (i, j, 0))],
        out_specs=(pl.BlockSpec((1, 1, 1, 1), lambda i, j: (i, j, 0, 0)),
                   pl.BlockSpec((1, 1, 1, 1), lambda i, j: (i, j, 0, 0))),
        compiler_params=pltpu.CompilerParams(
            # Both axes independent: each grid step writes its own partial, so v7x's
            # second TensorCore gets work even when N == 1.
            dimension_semantics=("parallel", "parallel"),
            vmem_limit_bytes=32 * 1024 * 1024),
    )
    nll_parts, sq_parts = kernel(x4, t3)

    nll_sum = jnp.sum(nll_parts)          # sum over rows of -log p(target)
    sq_sum = jnp.sum(sq_parts)            # sum over rows/classes of (onehot - p)^2

    brier_score = sq_sum / jnp.float32(rows)
    # weight computed "with torch.no_grad()" -> stop_gradient here
    weight = jnp.exp(
        jnp.clip(jax.lax.stop_gradient(brier_score), 0.0, temperature)
        / (temperature + 1.0)) - 1.0

    if size_average:
        return (nll_sum / jnp.float32(rows)) * weight
    return nll_sum * weight


def _reference(inp, target, temperature=1.0, size_average=False):
    """Pure-JAX reference mirroring the PyTorch module."""
    if inp.ndim > 2:
        n, c = inp.shape[0], inp.shape[1]
        x2 = jnp.transpose(inp.reshape(n, c, -1), (0, 2, 1)).reshape(-1, c)
    else:
        x2 = inp
    t = target.reshape(-1)
    logp = jax.nn.log_softmax(x2, axis=-1)
    logpt = jnp.take_along_axis(logp, t[:, None], axis=1)[:, 0]
    one_hot = jax.nn.one_hot(t, x2.shape[1], dtype=jnp.float32)
    p = jax.nn.softmax(x2, axis=-1)
    brier = jnp.sum((one_hot - p) ** 2) / x2.shape[0]
    weight = jnp.exp(jnp.clip(brier, 0.0, temperature) / (temperature + 1.0)) - 1.0
    loss = -logpt * weight
    return loss.mean() if size_average else loss.sum()


if __name__ == "__main__":
    # Module has no learnable parameters; only hyperparams temperature/size_average.
    N, C, H, W = 2, 4, 16, 16          # rows = N*H*W = 512, HW multiple of 128
    key = jax.random.PRNGKey(0)
    kx, kt = jax.random.split(key)
    x = jax.random.normal(kx, (N, C, H, W), dtype=jnp.float32)
    target = jax.random.randint(kt, (N, H, W), 0, C, dtype=jnp.int32)

    out = cross_entropy_weight_bs(x, target, temperature=1.0, size_average=False)
    out = jax.block_until_ready(out)
    ref = _reference(x, target, temperature=1.0, size_average=False)
    assert jnp.allclose(out, ref, rtol=1e-4, atol=1e-4), (out, ref)

    # Ragged-HW path (HW = 100 is not a multiple of 128): exercises pad + last-tile mask.
    H2, W2 = 10, 10
    kx2, kt2 = jax.random.split(kt)
    x_r = jax.random.normal(kx2, (N, C, H2, W2), dtype=jnp.float32)
    t_r = jax.random.randint(kt2, (N, H2, W2), 0, C, dtype=jnp.int32)
    out_r = jax.block_until_ready(
        cross_entropy_weight_bs(x_r, t_r, temperature=1.0, size_average=True))
    ref_r = _reference(x_r, t_r, temperature=1.0, size_average=True)
    assert jnp.allclose(out_r, ref_r, rtol=1e-4, atol=1e-4), (out_r, ref_r)

    print("KERNEL_OK")
</pallas_src>

<mosaic_0001>
module attributes {stable_mosaic.version = 11 : i64} {
  func.func @_ce_bs_kernel(%arg0: i32, %arg1: i32, %arg2: memref<1x4x2x128xf32, #tpu.memory_space<vmem>>, %arg3: memref<1x2x128xi32, #tpu.memory_space<vmem>>, %arg4: memref<1x1x1x1xf32, #tpu.memory_space<vmem>>, %arg5: memref<1x1x1x1xf32, #tpu.memory_space<vmem>>) attributes {dimension_semantics = [#tpu.dimension_semantics<parallel>, #tpu.dimension_semantics<parallel>], iteration_bounds = array<i64: 2, 1>, scalar_prefetch = 0 : i64, scratch_operands = 0 : i64, tpu.core_type = #tpu.core_type<tc>, window_params = [{transform_indices = @transform_0, window_bounds = array<i64: 1, 4, 2, 128>}, {transform_indices = @transform_1, window_bounds = array<i64: 1, 2, 128>}, {transform_indices = @transform_2, window_bounds = array<i64: 1, 1, 1, 1>}, {transform_indices = @transform_3, window_bounds = array<i64: 1, 1, 1, 1>}]} {
    %c0 = arith.constant 0 : index
    %c0_0 = arith.constant 0 : index
    %c0_1 = arith.constant 0 : index
    %0 = vector.load %arg3[%c0, %c0_0, %c0_1] : memref<1x2x128xi32, #tpu.memory_space<vmem>>, vector<1x2x128xi32>
    %1 = vector.shape_cast %0 : vector<1x2x128xi32> to vector<2x128xi32>
    %c0_2 = arith.constant 0 : index
    %c0_3 = arith.constant 0 : index
    %c0_4 = arith.constant 0 : index
    %c0_5 = arith.constant 0 : index
    %2 = vector.load %arg2[%c0_2, %c0_3, %c0_4, %c0_5] : memref<1x4x2x128xf32, #tpu.memory_space<vmem>>, vector<1x1x2x128xf32>
    %3 = vector.shape_cast %2 : vector<1x1x2x128xf32> to vector<2x128xf32>
    %c0_6 = arith.constant 0 : index
    %c1 = arith.constant 1 : index
    %c0_7 = arith.constant 0 : index
    %c0_8 = arith.constant 0 : index
    %4 = vector.load %arg2[%c0_6, %c1, %c0_7, %c0_8] : memref<1x4x2x128xf32, #tpu.memory_space<vmem>>, vector<1x1x2x128xf32>
    %5 = vector.shape_cast %4 : vector<1x1x2x128xf32> to vector<2x128xf32>
    %6 = arith.maximumf %3, %5 : vector<2x128xf32>
    %c0_9 = arith.constant 0 : index
    %c2 = arith.constant 2 : index
    %c0_10 = arith.constant 0 : index
    %c0_11 = arith.constant 0 : index
    %7 = vector.load %arg2[%c0_9, %c2, %c0_10, %c0_11] : memref<1x4x2x128xf32, #tpu.memory_space<vmem>>, vector<1x1x2x128xf32>
    %8 = vector.shape_cast %7 : vector<1x1x2x128xf32> to vector<2x128xf32>
    %9 = arith.maximumf %6, %8 : vector<2x128xf32>
    %c0_12 = arith.constant 0 : index
    %c3 = arith.constant 3 : index
    %c0_13 = arith.constant 0 : index
    %c0_14 = arith.constant 0 : index
    %10 = vector.load %arg2[%c0_12, %c3, %c0_13, %c0_14] : memref<1x4x2x128xf32, #tpu.memory_space<vmem>>, vector<1x1x2x128xf32>
    %11 = vector.shape_cast %10 : vector<1x1x2x128xf32> to vector<2x128xf32>
    %12 = arith.maximumf %9, %11 : vector<2x128xf32>
    %c0_15 = arith.constant 0 : index
    %c0_16 = arith.constant 0 : index
    %c0_17 = arith.constant 0 : index
    %c0_18 = arith.constant 0 : index
    %13 = vector.load %arg2[%c0_15, %c0_16, %c0_17, %c0_18] : memref<1x4x2x128xf32, #tpu.memory_space<vmem>>, vector<1x1x2x128xf32>
    %14 = vector.shape_cast %13 : vector<1x1x2x128xf32> to vector<2x128xf32>
    %15 = arith.subf %14, %12 : vector<2x128xf32>
    %16 = math.exp %15 : vector<2x128xf32>
    %17 = arith.mulf %16, %16 : vector<2x128xf32>
    %c0_i32 = arith.constant 0 : i32
    %18 = vector.broadcast %c0_i32 : i32 to vector<2x128xi32>
    %19 = arith.cmpi eq, %1, %18 : vector<2x128xi32>
    %cst = arith.constant 0.000000e+00 : f32
    %20 = vector.broadcast %cst : f32 to vector<2x128xf32>
    %21 = arith.select %19, %15, %20 : vector<2x128xi1>, vector<2x128xf32>
    %c0_19 = arith.constant 0 : index
    %c1_20 = arith.constant 1 : index
    %c0_21 = arith.constant 0 : index
    %c0_22 = arith.constant 0 : index
    %22 = vector.load %arg2[%c0_19, %c1_20, %c0_21, %c0_22] : memref<1x4x2x128xf32, #tpu.memory_space<vmem>>, vector<1x1x2x128xf32>
    %23 = vector.shape_cast %22 : vector<1x1x2x128xf32> to vector<2x128xf32>
    %24 = arith.subf %23, %12 : vector<2x128xf32>
    %25 = math.exp %24 : vector<2x128xf32>
    %26 = arith.mulf %25, %25 : vector<2x128xf32>
    %27 = arith.addf %16, %25 : vector<2x128xf32>
    %28 = arith.addf %17, %26 : vector<2x128xf32>
    %c1_i32 = arith.constant 1 : i32
    %29 = vector.broadcast %c1_i32 : i32 to vector<2x128xi32>
    %30 = arith.cmpi eq, %1, %29 : vector<2x128xi32>
    %31 = arith.select %30, %24, %21 : vector<2x128xi1>, vector<2x128xf32>
    %c0_23 = arith.constant 0 : index
    %c2_24 = arith.constant 2 : index
    %c0_25 = arith.constant 0 : index
    %c0_26 = arith.constant 0 : index
    %32 = vector.load %arg2[%c0_23, %c2_24, %c0_25, %c0_26] : memref<1x4x2x128xf32, #tpu.memory_space<vmem>>, vector<1x1x2x128xf32>
    %33 = vector.shape_cast %32 : vector<1x1x2x128xf32> to vector<2x128xf32>
    %34 = arith.subf %33, %12 : vector<2x128xf32>
    %35 = math.exp %34 : vector<2x128xf32>
    %36 = arith.mulf %35, %35 : vector<2x128xf32>
    %37 = arith.addf %27, %35 : vector<2x128xf32>
    %38 = arith.addf %28, %36 : vector<2x128xf32>
    %c2_i32 = arith.constant 2 : i32
    %39 = vector.broadcast %c2_i32 : i32 to vector<2x128xi32>
    %40 = arith.cmpi eq, %1, %39 : vector<2x128xi32>
    %41 = arith.select %40, %34, %31 : vector<2x128xi1>, vector<2x128xf32>
    %c0_27 = arith.constant 0 : index
    %c3_28 = arith.constant 3 : index
    %c0_29 = arith.constant 0 : index
    %c0_30 = arith.constant 0 : index
    %42 = vector.load %arg2[%c0_27, %c3_28, %c0_29, %c0_30] : memref<1x4x2x128xf32, #tpu.memory_space<vmem>>, vector<1x1x2x128xf32>
    %43 = vector.shape_cast %42 : vector<1x1x2x128xf32> to vector<2x128xf32>
    %44 = arith.subf %43, %12 : vector<2x128xf32>
    %45 = math.exp %44 : vector<2x128xf32>
    %46 = arith.mulf %45, %45 : vector<2x128xf32>
    %47 = arith.addf %37, %45 : vector<2x128xf32>
    %48 = arith.addf %38, %46 : vector<2x128xf32>
    %c3_i32 = arith.constant 3 : i32
    %49 = vector.broadcast %c3_i32 : i32 to vector<2x128xi32>
    %50 = arith.cmpi eq, %1, %49 : vector<2x128xi32>
    %51 = arith.select %50, %44, %41 : vector<2x128xi1>, vector<2x128xf32>
    %cst_31 = arith.constant 1.000000e+00 : f32
    %52 = vector.broadcast %cst_31 : f32 to vector<2x128xf32>
    %53 = arith.divf %52, %47 : vector<2x128xf32>
    %54 = math.log %47 : vector<2x128xf32>
    %55 = arith.subf %54, %51 : vector<2x128xf32>
    %56 = math.exp %51 : vector<2x128xf32>
    %57 = arith.mulf %56, %53 : vector<2x128xf32>
    %cst_32 = arith.constant 2.000000e+00 : f32
    %58 = vector.broadcast %cst_32 : f32 to vector<2x128xf32>
    %59 = arith.mulf %58, %57 : vector<2x128xf32>
    %cst_33 = arith.constant 1.000000e+00 : f32
    %60 = vector.broadcast %cst_33 : f32 to vector<2x128xf32>
    %61 = arith.subf %60, %59 : vector<2x128xf32>
    %62 = arith.mulf %53, %53 : vector<2x128xf32>
    %63 = arith.mulf %48, %62 : vector<2x128xf32>
    %64 = arith.addf %61, %63 : vector<2x128xf32>
    %65 = vector.shape_cast %55 : vector<2x128xf32> to vector<1x2x128xf32>
    %cst_34 = arith.constant dense<0.000000e+00> : vector<1xf32>
    %66 = vector.multi_reduction <add>, %65, %cst_34 [1, 2] : vector<1x2x128xf32> to vector<1xf32>
    %67 = vector.shape_cast %66 : vector<1xf32> to vector<1x1x1xf32>
    %68 = vector.extract %67[0, 0, 0] : f32 from vector<1x1x1xf32>
    %69 = vector.broadcast %68 : f32 to vector<1x1xf32>
    %70 = vector.shape_cast %69 : vector<1x1xf32> to vector<1x1x1x1xf32>
    %c0_35 = arith.constant 0 : index
    %c0_36 = arith.constant 0 : index
    %c0_37 = arith.constant 0 : index
    %c0_38 = arith.constant 0 : index
    %71 = vector.load %arg4[%c0_35, %c0_36, %c0_37, %c0_38] : memref<1x1x1x1xf32, #tpu.memory_space<vmem>>, vector<1x1x1x1xf32>
    tpu.vector_store %arg4[%c0_35, %c0_36, %c0_37, %c0_38], %70 {strides = array<i32>} : memref<1x1x1x1xf32, #tpu.memory_space<vmem>>, vector<1x1x1x1xf32>,
    %72 = vector.shape_cast %64 : vector<2x128xf32> to vector<1x2x128xf32>
    %cst_39 = arith.constant dense<0.000000e+00> : vector<1xf32>
    %73 = vector.multi_reduction <add>, %72, %cst_39 [1, 2] : vector<1x2x128xf32> to vector<1xf32>
    %74 = vector.shape_cast %73 : vector<1xf32> to vector<1x1x1xf32>
    %75 = vector.extract %74[0, 0, 0] : f32 from vector<1x1x1xf32>
    %76 = vector.broadcast %75 : f32 to vector<1x1xf32>
    %77 = vector.shape_cast %76 : vector<1x1xf32> to vector<1x1x1x1xf32>
    %c0_40 = arith.constant 0 : index
    %c0_41 = arith.constant 0 : index
    %c0_42 = arith.constant 0 : index
    %c0_43 = arith.constant 0 : index
    %78 = vector.load %arg5[%c0_40, %c0_41, %c0_42, %c0_43] : memref<1x1x1x1xf32, #tpu.memory_space<vmem>>, vector<1x1x1x1xf32>
    tpu.vector_store %arg5[%c0_40, %c0_41, %c0_42, %c0_43], %77 {strides = array<i32>} : memref<1x1x1x1xf32, #tpu.memory_space<vmem>>, vector<1x1x1x1xf32>,
    return
  }
  func.func @transform_0(%arg0: i32, %arg1: i32) -> (i32, i32, i32, i32) {
    %c0_i32 = arith.constant 0 : i32
    %c0_i32_0 = arith.constant 0 : i32
    %c0_i32_1 = arith.constant 0 : i32
    return %arg0, %c0_i32, %arg1, %c0_i32_0 : i32, i32, i32, i32
  }
  func.func @transform_1(%arg0: i32, %arg1: i32) -> (i32, i32, i32) {
    %c0_i32 = arith.constant 0 : i32
    %c0_i32_0 = arith.constant 0 : i32
    return %arg0, %arg1, %c0_i32 : i32, i32, i32
  }
  func.func @transform_2(%arg0: i32, %arg1: i32) -> (i32, i32, i32, i32) {
    %c0_i32 = arith.constant 0 : i32
    %c0_i32_0 = arith.constant 0 : i32
    %c0_i32_1 = arith.constant 0 : i32
    return %arg0, %arg1, %c0_i32, %c0_i32_0 : i32, i32, i32, i32
  }
  func.func @transform_3(%arg0: i32, %arg1: i32) -> (i32, i32, i32, i32) {
    %c0_i32 = arith.constant 0 : i32
    %c0_i32_0 = arith.constant 0 : i32
    %c0_i32_1 = arith.constant 0 : i32
    return %arg0, %arg1, %c0_i32, %c0_i32_0 : i32, i32, i32, i32
  }
}

</mosaic_0001>

<llo_original>
// kernel: tpu_custom_call.1
$region0: #{tpu_custom_call.1}
  #allocation0 [shape = 'u32[]', space=smem, size = 0x4, offset = 0x4, fixed_abs, tag = 'smem constant byte address 0x4 - core index']
  #allocation1 [shape = 'u32[72,128]{1,0:T(1,128)}', space=vmem, size = 0x9000, scoped, tag = 'internal scratch']
  %s0 = inlined_call_operand.hbm [shape: f32[2,4,2,128], index: 0, kind: input, shape index: {}]
  %s1 = inlined_call_operand.hbm [shape: s32[2,2,128], index: 1, kind: input, shape index: {}]
  %s2 = inlined_call_operand.vmem [shape: f32[2,1,1,1], index: 2, kind: output, shape index: {0}]
  %s3 = inlined_call_operand.vmem [shape: f32[2,1,1,1], index: 3, kind: output, shape index: {1}]
  %4 = xla_tuple %s2, %s3
  %s5 = sld [smem:[#allocation0]]
  $region57: #{tpu_custom_call.1} parent=0
    _
  %s7 = ssub.s32 1, %s5
  %s8 = scalar_select 0, %s7, %s5
  $region1: #{tpu_custom_call.1} parent=0
    #allocation2 [shape = 'u8[8192]{0}', space=vmem, size = 0x2000, scoped, tag = 'input window, operand 0']
    #allocation3 [shape = 's32[2]{0}', space=sflag, size = 0x8, scoped, tag = 'scoped memory for tpu_custom_call.1']
    #allocation4 [shape = 'u8[2048]{0}', space=vmem, size = 0x800, scoped, tag = 'input window, operand 1']
    #allocation5 [shape = 's32[2]{0}', space=sflag, size = 0x8, scoped, tag = 'scoped memory for tpu_custom_call.1']
    %9 = vsyncpa [#allocation3], 0
    %s10 = scalar_lea.sflag [#allocation3], 1
    %11 = vsyncpa %s10, 0
    %12 = vsyncpa [#allocation5], 0
    %s13 = scalar_lea.sflag [#allocation5], 1
    %14 = vsyncpa %s13, 0
    loop: start=0, step=1, limit=4
    $region2: #{tpu_custom_call.1} parent=1 // loop_pre_header
      _
    $region3: #{tpu_custom_call.1} parent=1 // loop_header
      %s16 = sphi 0, %s20
      %p17 = scmp.ge.s32.totalorder %s16, 4
      %s23 = sphi 0, %s35
      %s24 = sphi 0, %s31
      %s25 = sphi 0, %s23
      %s26 = sphi 0, %s24
      %s27 = sphi 0, %s25
      %s28 = sphi 0, %s26
      %s40 = sphi 0, %s42
      %s43 = sphi 0, %s40
      %s44 = sphi 0, %s43
      %s60 = sphi 0, %s44
      %s68 = sphi 0, %s70
      %s71 = sphi 0, %s68
      %s72 = sphi 0, %s71
      %s88 = sphi 0, %s72
      %s96 = sphi 0, %s98
      %s99 = sphi 0, %s96
      %s100 = sphi 0, %s99
      %s116 = sphi 0, %s100
      %s124 = sphi 0, %s126
      %s127 = sphi 0, %s124
      %s128 = sphi 0, %s127
      %s144 = sphi 0, %s128
    $region4: #{tpu_custom_call.1} parent=1 // loop_header_branch
      %19 = sbr.rel (%p17) target = $region8
    $region5: #{tpu_custom_call.1} parent=1 // loop_body
      %s21 = ssub.s32 %s16, 1
      %s22 = ssub.s32 %s16, 2
      %s29 = sadd.s32 1, %s24
      %p30 = scmp.ge.s32.totalorder %s29, 1
      %s31 = scalar_select %p30, 0, %s29
      %s32 = sadd.s32 1, %s23
      %s33 = scalar_select %p30, %s32, %s23
      %p34 = scmp.ge.s32.totalorder %s33, 2
      %s35 = scalar_select %p34, 0, %s33
      %s36 = ssub.s32 %s23, %s35
      %s37 = ssub.s32 %s24, %s31
      %s38 = sor.u32 %s36, %s37
      %p39 = scmp.eq.s32.totalorder %s38, 0
      %s41 = sadd.s32 %s40, 1
      %s42 = scalar_select %p39, %s40, %s41
      %p45 = pneg %p39
      %p46 = scmp.eq.s32.totalorder %s16, 1
      %p47 = por %p45, %p46
      %p48 = scmp.ne.s32.totalorder %s40, %s43
      %p49 = scmp.eq.s32.totalorder %s16, 0
      %p50 = por %p48, %p49
      %p51 = scmp.ne.s32.totalorder %s40, %s43
      %p52 = scmp.eq.s32.totalorder %s21, 1
      %p53 = por %p51, %p52
      %p54 = scmp.ne.s32.totalorder %s43, %s44
      %p55 = scmp.eq.s32.totalorder %s21, 0
      %p56 = por %p54, %p55
      %p57 = scmp.ne.s32.totalorder %s43, %s44
      %p58 = scmp.eq.s32.totalorder %s22, 1
      %p59 = por %p57, %p58
      %p61 = scmp.ne.s32.totalorder %s44, %s60
      %p62 = scmp.eq.s32.totalorder %s22, 0
      %p63 = por %p61, %p62
      %s64 = ssub.s32 %s23, %s35
      %s65 = ssub.s32 %s24, %s31
      %s66 = sor.u32 %s64, %s65
      %p67 = scmp.eq.s32.totalorder %s66, 0
      %s69 = sadd.s32 %s68, 1
      %s70 = scalar_select %p67, %s68, %s69
      %p73 = pneg %p67
      %p74 = scmp.eq.s32.totalorder %s16, 1
      %p75 = por %p73, %p74
      %p76 = scmp.ne.s32.totalorder %s68, %s71
      %p77 = scmp.eq.s32.totalorder %s16, 0
      %p78 = por %p76, %p77
      %p79 = scmp.ne.s32.totalorder %s68, %s71
      %p80 = scmp.eq.s32.totalorder %s21, 1
      %p81 = por %p79, %p80
      %p82 = scmp.ne.s32.totalorder %s71, %s72
      %p83 = scmp.eq.s32.totalorder %s21, 0
      %p84 = por %p82, %p83
      %p85 = scmp.ne.s32.totalorder %s71, %s72
      %p86 = scmp.eq.s32.totalorder %s22, 1
      %p87 = por %p85, %p86
      %p89 = scmp.ne.s32.totalorder %s72, %s88
      %p90 = scmp.eq.s32.totalorder %s22, 0
      %p91 = por %p89, %p90
      %s92 = ssub.s32 %s23, %s35
      %s93 = ssub.s32 %s24, %s31
      %s94 = sor.u32 %s92, %s93
      %p95 = scmp.eq.s32.totalorder %s94, 0
      %s97 = sadd.s32 %s96, 1
      %s98 = scalar_select %p95, %s96, %s97
      %p101 = pneg %p95
      %p102 = scmp.eq.s32.totalorder %s16, 1
      %p103 = por %p101, %p102
      %p104 = scmp.ne.s32.totalorder %s96, %s99
      %p105 = scmp.eq.s32.totalorder %s16, 0
      %p106 = por %p104, %p105
      %p107 = scmp.ne.s32.totalorder %s96, %s99
      %p108 = scmp.eq.s32.totalorder %s21, 1
      %p109 = por %p107, %p108
      %p110 = scmp.ne.s32.totalorder %s99, %s100
      %p111 = scmp.eq.s32.totalorder %s21, 0
      %p112 = por %p110, %p111
      %p113 = scmp.ne.s32.totalorder %s99, %s100
      %p114 = scmp.eq.s32.totalorder %s22, 1
      %p115 = por %p113, %p114
      %p117 = scmp.ne.s32.totalorder %s100, %s116
      %p118 = scmp.eq.s32.totalorder %s22, 0
      %p119 = por %p117, %p118
      %s120 = ssub.s32 %s23, %s35
      %s121 = ssub.s32 %s24, %s31
      %s122 = sor.u32 %s120, %s121
      %p123 = scmp.eq.s32.totalorder %s122, 0
      %s125 = sadd.s32 %s124, 1
      %s126 = scalar_select %p123, %s124, %s125
      %p129 = pneg %p123
      %p130 = scmp.eq.s32.totalorder %s16, 1
      %p131 = por %p129, %p130
      %p132 = scmp.ne.s32.totalorder %s124, %s127
      %p133 = scmp.eq.s32.totalorder %s16, 0
      %p134 = por %p132, %p133
      %p135 = scmp.ne.s32.totalorder %s124, %s127
      %p136 = scmp.eq.s32.totalorder %s21, 1
      %p137 = por %p135, %p136
      %p138 = scmp.ne.s32.totalorder %s127, %s128
      %p139 = scmp.eq.s32.totalorder %s21, 0
      %p140 = por %p138, %p139
      %p141 = scmp.ne.s32.totalorder %s127, %s128
      %p142 = scmp.eq.s32.totalorder %s22, 1
      %p143 = por %p141, %p142
      %p145 = scmp.ne.s32.totalorder %s128, %s144
      %p146 = scmp.eq.s32.totalorder %s22, 0
      %p147 = por %p145, %p146
      %p148 = scmp.le.s32.totalorder 1, %s16
      %p149 = scmp.lt.s32.totalorder %s16, 3
      %p150 = pnand %p148, %p149
      %p151 = pneg %p150
      // Predicated region
      $region9: #{tpu_custom_call.1} parent=5 // pred_check
        _
      $region10: #{tpu_custom_call.1} parent=5 // pred_check_branch
        %153 = sbr.rel (%p150) target = $region12
      $region11: #{tpu_custom_call.1} parent=5 // pred_region
        %s154 = ssub.s32 %s16, 1
      $region12: #{tpu_custom_call.1} parent=5 // pred_fallthru
        _
      %p155 = scmp.lt.s32.totalorder %s16, 2
      // Predicated region
      $region13: #{tpu_custom_call.1} parent=5 // pred_check
        %p156 = pneg %p155
      $region14: #{tpu_custom_call.1} parent=5 // pred_check_branch
        %158 = sbr.rel (%p156) target = $region16
      $region15: #{tpu_custom_call.1} parent=5 // pred_region
        // Predicated region
        $region17: #{tpu_custom_call.1} parent=15 // pred_check
          %p159 = pneg %p50
        $region18: #{tpu_custom_call.1} parent=15 // pred_check_branch
          %161 = sbr.rel (%p159) target = $region20
        $region19: #{tpu_custom_call.1} parent=15 // pred_region
          %s162 = sand.u32 %s40, 1
          %s163 = scalar_lea.sflag [#allocation3], %s162
          %s164 = sand.u32 %s40, 1
          %s165 = smul.addr %s164, 8
          %s166 = scalar_lea.vmem [#allocation2], %s165
          %168 = vsyncadd %s163, 0
          %s169 = smul.addr %s23, 4
          %s170 = sadd.s32 %s24, %s169
          %s171 = smul.addr %s170, 2
          %s172 = scalar_lea.hbm %s0, %s171
          %s173 = sshll.u32 %s172, 4
          %s174 = int_to_ptr.hbm [resolvable:$true] %s173
          %s175 = sshll.u32 %s166, 4
          %s176 = int_to_ptr.vmem [resolvable:$true] %s175
          %181 = dma.hbm_to_vmem [thread:$0]  %s174, 128, %s176, %s163, 32, 32, 2
        $region20: #{tpu_custom_call.1} parent=15 // pred_fallthru
          _
        // Predicated region
        $region21: #{tpu_custom_call.1} parent=15 // pred_check
          %p182 = pneg %p78
        $region22: #{tpu_custom_call.1} parent=15 // pred_check_branch
          %184 = sbr.rel (%p182) target = $region24
        $region23: #{tpu_custom_call.1} parent=15 // pred_region
          %s185 = sand.u32 %s68, 1
          %s186 = scalar_lea.sflag [#allocation5], %s185
          %s187 = sand.u32 %s68, 1
          %s188 = smul.addr %s187, 2
          %s189 = scalar_lea.vmem [#allocation4], %s188
          %191 = vsyncadd %s186, 0
          %s192 = sadd.s32 %s24, %s23
          %s193 = smul.addr %s192, 2
          %s194 = scalar_lea.hbm %s1, %s193
          %s196 = sshll.u32 %s194, 4
          %s197 = int_to_ptr.hbm [resolvable:$true] %s196
          %s198 = sshll.u32 %s189, 4
          %s199 = int_to_ptr.vmem [resolvable:$true] %s198
          %201 = dma.hbm_to_vmem [thread:$0]  %s197, 32, %s199, %s186
        $region24: #{tpu_custom_call.1} parent=15 // pred_fallthru
          _
      $region16: #{tpu_custom_call.1} parent=5 // pred_fallthru
        _
      %p202 = scmp.le.s32.totalorder 1, %s16
      %p203 = scmp.lt.s32.totalorder %s16, 3
      %p204 = pnand %p202, %p203
      %p205 = pneg %p204
      // Predicated region
      $region25: #{tpu_custom_call.1} parent=5 // pred_check
        _
      $region26: #{tpu_custom_call.1} parent=5 // pred_check_branch
        %207 = sbr.rel (%p204) target = $region28
      $region27: #{tpu_custom_call.1} parent=5 // pred_region
        %s208 = ssub.s32 %s16, 1
        %s209 = sand.u32 %s43, 1
        %s210 = scalar_lea.sflag [#allocation3], %s209
        %s211 = sand.u32 %s43, 1
        %s212 = smul.addr %s211, 8
        %s213 = scalar_lea.vmem [#allocation2], %s212
        // Predicated region
        $region29: #{tpu_custom_call.1} parent=27 // pred_check
          %p214 = pneg %p56
        $region30: #{tpu_custom_call.1} parent=27 // pred_check_branch
          %216 = sbr.rel (%p214) target = $region32
        $region31: #{tpu_custom_call.1} parent=27 // pred_region
          %218 = dma.done %s210, 128
        $region32: #{tpu_custom_call.1} parent=27 // pred_fallthru
          _
        %s219 = sand.u32 %s71, 1
        %s220 = scalar_lea.sflag [#allocation5], %s219
        %s221 = sand.u32 %s71, 1
        %s222 = smul.addr %s221, 2
        %s223 = scalar_lea.vmem [#allocation4], %s222
        // Predicated region
        $region33: #{tpu_custom_call.1} parent=27 // pred_check
          %p224 = pneg %p84
        $region34: #{tpu_custom_call.1} parent=27 // pred_check_branch
          %226 = sbr.rel (%p224) target = $region36
        $region35: #{tpu_custom_call.1} parent=27 // pred_region
          %228 = dma.done %s220, 32
        $region36: #{tpu_custom_call.1} parent=27 // pred_fallthru
          _
        %s229 = sand.u32 %s43, 1
        %s230 = scalar_lea.sflag [#allocation3], %s229
        %s231 = sand.u32 %s43, 1
        %s232 = smul.addr %s231, 8
        %s233 = scalar_lea.vmem [#allocation2], %s232
        %p234 = pneg %p56
        %p235 = pneg %p53
        %s236 = sand.u32 %s71, 1
        %s237 = scalar_lea.sflag [#allocation5], %s236
        %s238 = sand.u32 %s71, 1
        %s239 = smul.addr %s238, 2
        %s240 = scalar_lea.vmem [#allocation4], %s239
        %p241 = pneg %p84
        %p242 = pneg %p81
        %p243 = pneg %p112
        %p244 = pneg %p109
        %p245 = scmp.lt.s32.totalorder %s25, 1
        %s246 = scalar_select %p245, %s25, 1
        %p247 = scmp.lt.s32.totalorder %s26, 0
        %s248 = scalar_select %p247, %s26, 0
        %s249 = sadd.s32 %s248, %s246
        %s250 = scalar_lea.vmem %s2, %s249
        %p251 = pneg %p140
        %p252 = pneg %p137
        %p253 = scmp.lt.s32.totalorder %s25, 1
        %s254 = scalar_select %p253, %s25, 1
        %p255 = scmp.lt.s32.totalorder %s26, 0
        %s256 = scalar_select %p255, %s26, 0
        %s257 = sadd.s32 %s256, %s254
        %s258 = scalar_lea.vmem %s3, %s257
        %p259 = scmp.lt.s32.totalorder %s25, 1
        %s260 = scalar_select %p259, %s25, 1
        %p261 = scmp.lt.s32.totalorder %s26, 0
        %s262 = scalar_select %p261, %s26, 0
        %s263 = sadd.s32 %s262, %s260
        %s264 = scalar_lea.vmem %s2, %s263
        %p265 = scmp.lt.s32.totalorder %s25, 1
        %s266 = scalar_select %p265, %s25, 1
        %p267 = scmp.lt.s32.totalorder %s26, 0
        %s268 = scalar_select %p267, %s26, 0
        %s269 = sadd.s32 %s268, %s266
        %s270 = scalar_lea.vmem %s3, %s269
        %v271 = vld [vmem:[%s223] sm:$0x3]
        %v272 = vld [vmem:[%s213] sm:$0x3]
        %s273 = scalar_lea.vmem %s213, 2 [#allocation2]
        %v274 = vld [vmem:[%s273] sm:$0x3]
        %v275 = vmax.f32 %v272, %v274
        %s276 = scalar_lea.vmem %s213, 4 [#allocation2]
        %v277 = vld [vmem:[%s276] sm:$0x3]
        %v278 = vmax.f32 %v275, %v277
        %s279 = scalar_lea.vmem %s213, 6 [#allocation2]
        %v280 = vld [vmem:[%s279] sm:$0x3]
        %v281 = vmax.f32 %v278, %v280
        %v282 = vsub.f32 %v272, %v281
        %v283 = vmul.f32 %v282, 1.442695
        %v284 = vpow.pop %v283
        %v285 = vmul.f32 %v284, %v284
        %vm286 = vcmp.eq.s32.totalorder %v271, 0
        %v287 = vsel %vm286, %v282, 0.0
        %v288 = vsub.f32 %v274, %v281
        %v289 = vmul.f32 %v288, 1.442695
        %v290 = vpow.pop %v289
        %v291 = vmul.f32 %v290, %v290
        %v292 = vadd.f32 %v284, %v290
        %v293 = vadd.f32 %v285, %v291
        %vm294 = vcmp.eq.s32.totalorder %v271, 1
        %v295 = vsel %vm294, %v288, %v287
        %v296 = vsub.f32 %v277, %v281
        %v297 = vmul.f32 %v296, 1.442695
        %v298 = vpow.pop %v297
        %v299 = vmul.f32 %v298, %v298
        %v300 = vadd.f32 %v292, %v298
        %v301 = vadd.f32 %v293, %v299
        %vm302 = vcmp.eq.s32.totalorder %v271, 2
        %v303 = vsel %vm302, %v296, %v295
        %v304 = vsub.f32 %v280, %v281
        %v305 = vmul.f32 %v304, 1.442695
        %v306 = vpow.pop %v305
        %v307 = vmul.f32 %v306, %v306
        %v308 = vadd.f32 %v300, %v306
        %v309 = vadd.f32 %v301, %v307
        %vm310 = vcmp.eq.s32.totalorder %v271, 3
        %v311 = vsel %vm310, %v304, %v303
        %v312 = vrcp.pop %v308
        %v313 = vmul.f32 %v308, %v312
        %v314 = vsub.f32 1.0, %v313
        %v315 = vmul.f32 %v312, %v314
        %v316 = vadd.f32 %v312, %v315
        %vm317 = vweird.f32 %v308
        %vm318 = vweird.f32 %v312
        %vm319 = vmor %vm317, %vm318
        %v320 = vsel %vm319, %v312, %v316
        %v321 = vand.u32 2147483647, %v308
        %vm322 = vcmp.eq.f32.partialorder %v321, 8.507059e+37
        %v323 = vand.u32 %v308, 2147483648
        %v324 = vor.u32 1.1754944e-38, %v323
        %v325 = vsel %vm322, %v324, %v320
        %v326 = vmul.f32 1.0, %v325
        %v327 = vlog2.pop %v308
        %v328 = vmul.f32 %v327, 0.6931472
        %v329 = vsub.f32 %v328, %v311
        %v330 = vmul.f32 %v311, 1.442695
        %v331 = vpow.pop %v330
        %v332 = vmul.f32 %v331, %v326
        %v333 = vmul.f32 %v332, 2.0
        %v334 = vsub.f32 1.0, %v333
        %v335 = vmul.f32 %v326, %v326
        %v336 = vmul.f32 %v309, %v335
        %v337 = vadd.f32 %v334, %v336
        %vm338 = vcmask 1041408
        %v339 = vsel %vm338, %v329, 0.0
        %340 = vadd.xlane.f32.xlu0 %v339
        %v341 = vpop.xlane.xlu0 %340
        %v342 = vrot.slane %v341, 4
        %v343 = vadd.f32 %v341, %v342
        %v344 = vrot.slane %v343, 2
        %v345 = vadd.f32 %v343, %v344
        %v346 = vrot.slane %v345, 1
        %v347 = vadd.f32 %v345, %v346
        %s348 = vtos %v347
        %v349 = vstv %s348
        %vm350 = vcmask 0
        %351 = vst.msk [vmem:[%s264] sm:$0x1] %vm350, %v349
        %v352 = vsel %vm338, %v337, 0.0
        %353 = vadd.xlane.f32.xlu0 %v352
        %v354 = vpop.xlane.xlu0 %353
        %v355 = vrot.slane %v354, 4
        %v356 = vadd.f32 %v354, %v355
        %v357 = vrot.slane %v356, 2
        %v358 = vadd.f32 %v356, %v357
        %v359 = vrot.slane %v358, 1
        %v360 = vadd.f32 %v358, %v359
        %s361 = vtos %v360
        %v362 = vstv %s361
        %363 = vst.msk [vmem:[%s270] sm:$0x1] %vm350, %v362
        %p364 = scmp.lt.s32.totalorder %s25, 1
        %s365 = scalar_select %p364, %s25, 1
        %p366 = scmp.lt.s32.totalorder %s26, 0
        %s367 = scalar_select %p366, %s26, 0
        %s368 = sadd.s32 %s367, %s365
        %s369 = scalar_lea.vmem %s2, %s368
        %p370 = scmp.lt.s32.totalorder %s25, 1
        %s371 = scalar_select %p370, %s25, 1
        %p372 = scmp.lt.s32.totalorder %s26, 0
        %s373 = scalar_select %p372, %s26, 0
        %s374 = sadd.s32 %s373, %s371
        %s375 = scalar_lea.vmem %s3, %s374
        // Predicated region
        $region37: #{tpu_custom_call.1} parent=27 // pred_check
          %p376 = pneg %p109
        $region38: #{tpu_custom_call.1} parent=27 // pred_check_branch
          %378 = sbr.rel (%p376) target = $region40
        $region39: #{tpu_custom_call.1} parent=27 // pred_region
          _
        $region40: #{tpu_custom_call.1} parent=27 // pred_fallthru
          _
        // Predicated region
        $region41: #{tpu_custom_call.1} parent=27 // pred_check
          %p379 = pneg %p137
        $region42: #{tpu_custom_call.1} parent=27 // pred_check_branch
          %381 = sbr.rel (%p379) target = $region44
        $region43: #{tpu_custom_call.1} parent=27 // pred_region
          _
        $region44: #{tpu_custom_call.1} parent=27 // pred_fallthru
          _
      $region28: #{tpu_custom_call.1} parent=5 // pred_fallthru
        _
      %p382 = scmp.le.s32.totalorder 2, %s16
      // Predicated region
      $region45: #{tpu_custom_call.1} parent=5 // pred_check
        %p383 = pneg %p382
      $region46: #{tpu_custom_call.1} parent=5 // pred_check_branch
        %385 = sbr.rel (%p383) target = $region48
      $region47: #{tpu_custom_call.1} parent=5 // pred_region
        %s386 = ssub.s32 %s16, 2
        // Predicated region
        $region49: #{tpu_custom_call.1} parent=47 // pred_check
          %p387 = pneg %p115
        $region50: #{tpu_custom_call.1} parent=47 // pred_check_branch
          %389 = sbr.rel (%p387) target = $region52
        $region51: #{tpu_custom_call.1} parent=47 // pred_region
          %p390 = scmp.lt.s32.totalorder %s27, 1
          %s391 = scalar_select %p390, %s27, 1
          %p392 = scmp.lt.s32.totalorder %s28, 0
          %s393 = scalar_select %p392, %s28, 0
          %s394 = sadd.s32 %s393, %s391
          %s395 = scalar_lea.vmem %s2, %s394
        $region52: #{tpu_custom_call.1} parent=47 // pred_fallthru
          _
        // Predicated region
        $region53: #{tpu_custom_call.1} parent=47 // pred_check
          %p396 = pneg %p143
        $region54: #{tpu_custom_call.1} parent=47 // pred_check_branch
          %398 = sbr.rel (%p396) target = $region56
        $region55: #{tpu_custom_call.1} parent=47 // pred_region
          %p399 = scmp.lt.s32.totalorder %s27, 1
          %s400 = scalar_select %p399, %s27, 1
          %p401 = scmp.lt.s32.totalorder %s28, 0
          %s402 = scalar_select %p401, %s28, 0
          %s403 = sadd.s32 %s402, %s400
          %s404 = scalar_lea.vmem %s3, %s403
        $region56: #{tpu_custom_call.1} parent=47 // pred_fallthru
          _
      $region48: #{tpu_custom_call.1} parent=5 // pred_fallthru
        _
    $region6: #{tpu_custom_call.1} parent=1 // loop_footer
      %s20 = sadd.s32 1, %s16
    $region7: #{tpu_custom_call.1} parent=1 // loop_footer_branch
      %15 = sbr.rel target = $region3
    $region8: #{tpu_custom_call.1} parent=1 // loop_exit
      _
    %405 = vsyncpa [#allocation3], 1
    %s406 = scalar_lea.sflag [#allocation3], 1
    %407 = vsyncpa %s406, 1
    %408 = vsyncpa [#allocation5], 1
    %s409 = scalar_lea.sflag [#allocation5], 1
    %410 = vsyncpa %s409, 1

</llo_original>
